<compile_context>
chip_gen: v6e
topology: v6e:2x2x1
jax: 0.10.0
libtpu: 0.0.40
codegen_flags: <defaults>
</compile_context>

<pallas_src>
import functools

import jax
import jax.numpy as jnp
import numpy as np
from jax.experimental import pallas as pl
from jax.experimental.pallas import tpu as pltpu


def _stats_kernel(x_ref, sum_ref, g_ref, *, msp, tm, need_mask):
    """Accumulate colsum(x) (Cin,1) and Gram G = x x^T (Cin,Cin) over all tiles."""
    n = pl.program_id(0)
    m = pl.program_id(1)

    @pl.when((n == 0) & (m == 0))
    def _():
        sum_ref[...] = jnp.zeros_like(sum_ref)
        g_ref[...] = jnp.zeros_like(g_ref)

    x = x_ref[...]                                   # (Cin, tm)
    if need_mask:
        lane = jax.lax.broadcasted_iota(jnp.int32, x.shape, 1)
        valid = (m * tm + lane) < msp
        x = jnp.where(valid, x, jnp.zeros_like(x))

    sum_ref[...] += jnp.sum(x.astype(jnp.float32), axis=1, keepdims=True)
    g_ref[...] += jax.lax.dot_general(
        x, x, (((1,), (1,)), ((), ())), preferred_element_type=jnp.float32)


def _conv_bn_act_kernel(x_ref, w_ref, b_ref, o_ref, *, act):
    """out = act(W' @ x + shift), with BN folded into W' / shift."""
    y = jax.lax.dot_general(
        w_ref[...], x_ref[...], (((1,), (0,)), ((), ())),
        preferred_element_type=jnp.float32)          # (Cout, tm)
    y = y + b_ref[...]                               # (Cout, 1) broadcast over lanes
    o_ref[...] = act(y).astype(o_ref.dtype)


def _pick_tile(msp, desired):
    if msp <= desired:
        return msp                                   # full spatial extent: always legal
    return max(128, (desired // 128) * 128)          # multiple of 128 (lane-dense)


def conv3d_bn_forward(x, w, gamma, beta, *, eps=1e-5, act=None, tm=512):
    """x: (N, Cin, D, H, W), w: (Cout, Cin, 1, 1, 1) -> (N, Cout, D, H, W)."""
    N, Cin, D, H, W = x.shape
    Cout = w.shape[0]
    Msp = D * H * W
    Mtot = N * Msp

    x3 = x.reshape(N, Cin, Msp)                      # contiguous reshape: no HBM copy
    tile = _pick_tile(Msp, tm)
    n_tiles = pl.cdiv(Msp, tile)
    need_mask = (Msp % tile) != 0

    vmem_limit = 48 * 1024 * 1024                    # safe on v5e/v6e/v7x

    # ---- pass 1: x-side statistics (reads x once; writes only (Cin,1)+(Cin,Cin))
    colsum, gram = pl.pallas_call(
        functools.partial(_stats_kernel, msp=Msp, tm=tile, need_mask=need_mask),
        out_shape=(
            jax.ShapeDtypeStruct((Cin, 1), jnp.float32),
            jax.ShapeDtypeStruct((Cin, Cin), jnp.float32),
        ),
        grid=(N, n_tiles),
        in_specs=[pl.BlockSpec((None, Cin, tile), lambda n, m: (n, 0, m))],
        out_specs=(
            pl.BlockSpec((Cin, 1), lambda n, m: (0, 0)),      # resident accumulator
            pl.BlockSpec((Cin, Cin), lambda n, m: (0, 0)),    # resident accumulator
        ),
        compiler_params=pltpu.CompilerParams(
            dimension_semantics=("arbitrary", "arbitrary"),
            vmem_limit_bytes=vmem_limit),
    )(x3)

    # ---- fold BN (training-mode batch stats, biased variance) into the weights
    w2 = w.reshape(Cout, Cin).astype(jnp.float32)
    sum_y = w2 @ colsum[:, 0]                        # (Cout,)
    mean = sum_y / Mtot
    ey2 = jnp.sum((w2 @ gram) * w2, axis=1) / Mtot   # diag(W G W^T) / Mtot
    var = ey2 - mean * mean
    # TODO(synk): E[y^2] - mean^2 is cancellation-prone if |mean| >> std; a
    #             shifted / Welford-style accumulation would be more robust.
    scale = gamma.astype(jnp.float32) * jax.lax.rsqrt(var + eps)
    w_folded = (scale[:, None] * w2).astype(x.dtype)
    shift = (beta.astype(jnp.float32) - mean * scale).reshape(Cout, 1)

    act_fn = act if act is not None else (lambda v: v)   # nn.Identity default

    # ---- pass 2: fused conv + BN affine + activation (reads x, writes out)
    out3 = pl.pallas_call(
        functools.partial(_conv_bn_act_kernel, act=act_fn),
        out_shape=jax.ShapeDtypeStruct((N, Cout, Msp), x.dtype),
        grid=(N, n_tiles),
        in_specs=[
            pl.BlockSpec((None, Cin, tile), lambda n, m: (n, 0, m)),
            pl.BlockSpec((Cout, Cin), lambda n, m: (0, 0)),
            pl.BlockSpec((Cout, 1), lambda n, m: (0, 0)),
        ],
        out_specs=pl.BlockSpec((None, Cout, tile), lambda n, m: (n, 0, m)),
        compiler_params=pltpu.CompilerParams(
            dimension_semantics=("parallel", "parallel"),
            vmem_limit_bytes=vmem_limit),
    )(x3, w_folded, shift)

    return out3.reshape(N, Cout, D, H, W)


if __name__ == "__main__":
    # Small shapes consistent with the module: x is (N, Cin, D, H, W).
    N, Cin, Cout, D, H, W = 2, 4, 8, 4, 8, 8
    key = jax.random.PRNGKey(0)
    kx, kw = jax.random.split(key)

    x = jax.random.normal(kx, (N, Cin, D, H, W), dtype=jnp.float32)

    # Conv weight init: normal(0, sqrt(2 / fan_out)), fan_out = k0*k1*out_ch = 1*1*Cout.
    fan_out = 1 * 1 * Cout
    w = jax.random.normal(kw, (Cout, Cin, 1, 1, 1), dtype=jnp.float32) * np.sqrt(2.0 / fan_out)

    # BatchNorm params: weight = bn_weight_init (=1), bias = 0.
    gamma = jnp.ones((Cout,), dtype=jnp.float32)
    beta = jnp.zeros((Cout,), dtype=jnp.float32)

    out = conv3d_bn_forward(x, w, gamma, beta)
    out = jax.block_until_ready(out)

    # Pure-JAX reference (1x1x1 conv + training-mode BN with identity act).
    x_flat = jnp.transpose(x, (0, 2, 3, 4, 1)).reshape(-1, Cin)
    y_ref = x_flat @ w.reshape(Cout, Cin).T
    mean_ref = jnp.mean(y_ref, axis=0, keepdims=True)
    var_ref = jnp.mean((y_ref - mean_ref) ** 2, axis=0, keepdims=True)
    ref_flat = (y_ref - mean_ref) * jax.lax.rsqrt(var_ref + 1e-5) * gamma + beta
    ref = jnp.transpose(ref_flat.reshape(N, D, H, W, Cout), (0, 4, 1, 2, 3))

    np.testing.assert_allclose(np.asarray(out), np.asarray(ref), rtol=1e-4, atol=1e-4)
    print("KERNEL_OK")
</pallas_src>

<mosaic_0001>
module attributes {stable_mosaic.version = 11 : i64} {
  func.func @_stats_kernel(%arg0: i32, %arg1: i32, %arg2: memref<1x4x256xf32, #tpu.memory_space<vmem>>, %arg3: memref<4x1xf32, #tpu.memory_space<vmem>>, %arg4: memref<4x4xf32, #tpu.memory_space<vmem>>) attributes {dimension_semantics = [#tpu.dimension_semantics<arbitrary>, #tpu.dimension_semantics<arbitrary>], iteration_bounds = array<i64: 2, 1>, scalar_prefetch = 0 : i64, scratch_operands = 0 : i64, tpu.core_type = #tpu.core_type<tc>, window_params = [{transform_indices = @transform_0, window_bounds = array<i64: 1, 4, 256>}, {pipeline_mode = #tpu.pipeline_mode<synchronous>, transform_indices = @transform_1, window_bounds = array<i64: 4, 1>}, {pipeline_mode = #tpu.pipeline_mode<synchronous>, transform_indices = @transform_2, window_bounds = array<i64: 4, 4>}]} {
    %c0_i32 = arith.constant 0 : i32
    %0 = arith.cmpi eq, %arg0, %c0_i32 : i32
    %c0_i32_0 = arith.constant 0 : i32
    %1 = arith.cmpi eq, %arg1, %c0_i32_0 : i32
    %2 = arith.andi %0, %1 : i1
    %3 = arith.extui %2 : i1 to i32
    %c0_i32_1 = arith.constant 0 : i32
    %4 = arith.cmpi ne, %3, %c0_i32_1 : i32
    scf.if %4 {
      %cst_13 = arith.constant 0.000000e+00 : f32
      %16 = vector.broadcast %cst_13 : f32 to vector<4x1xf32>
      %c0_14 = arith.constant 0 : index
      %c0_15 = arith.constant 0 : index
      %17 = vector.load %arg3[%c0_14, %c0_15] : memref<4x1xf32, #tpu.memory_space<vmem>>, vector<4x1xf32>
      tpu.vector_store %arg3[%c0_14, %c0_15], %16 {strides = array<i32>} : memref<4x1xf32, #tpu.memory_space<vmem>>, vector<4x1xf32>,
      %cst_16 = arith.constant 0.000000e+00 : f32
      %18 = vector.broadcast %cst_16 : f32 to vector<4x4xf32>
      %c0_17 = arith.constant 0 : index
      %c0_18 = arith.constant 0 : index
      %19 = vector.load %arg4[%c0_17, %c0_18] : memref<4x4xf32, #tpu.memory_space<vmem>>, vector<4x4xf32>
      tpu.vector_store %arg4[%c0_17, %c0_18], %18 {strides = array<i32>} : memref<4x4xf32, #tpu.memory_space<vmem>>, vector<4x4xf32>,
    } else {
    }
    %c0 = arith.constant 0 : index
    %c0_2 = arith.constant 0 : index
    %c0_3 = arith.constant 0 : index
    %5 = vector.load %arg2[%c0, %c0_2, %c0_3] : memref<1x4x256xf32, #tpu.memory_space<vmem>>, vector<1x4x256xf32>
    %6 = vector.shape_cast %5 : vector<1x4x256xf32> to vector<4x256xf32>
    %c0_4 = arith.constant 0 : index
    %c0_5 = arith.constant 0 : index
    %7 = vector.load %arg3[%c0_4, %c0_5] : memref<4x1xf32, #tpu.memory_space<vmem>>, vector<4x1xf32>
    %cst = arith.constant dense<0.000000e+00> : vector<4xf32>
    %8 = vector.multi_reduction <add>, %6, %cst [1] : vector<4x256xf32> to vector<4xf32>
    %9 = vector.shape_cast %8 : vector<4xf32> to vector<4x1xf32>
    %10 = arith.addf %7, %9 : vector<4x1xf32>
    %c0_6 = arith.constant 0 : index
    %c0_7 = arith.constant 0 : index
    %11 = vector.load %arg3[%c0_6, %c0_7] : memref<4x1xf32, #tpu.memory_space<vmem>>, vector<4x1xf32>
    tpu.vector_store %arg3[%c0_6, %c0_7], %10 {strides = array<i32>} : memref<4x1xf32, #tpu.memory_space<vmem>>, vector<4x1xf32>,
    %c0_8 = arith.constant 0 : index
    %c0_9 = arith.constant 0 : index
    %12 = vector.load %arg4[%c0_8, %c0_9] : memref<4x4xf32, #tpu.memory_space<vmem>>, vector<4x4xf32>
    %cst_10 = arith.constant dense<0.000000e+00> : vector<4x4xf32>
    %13 = tpu.matmul %6, %6, %cst_10 {dimension_numbers = #tpu.dot_dimension_numbers<[1], [1], [0], [0], [0, 0, 1, 0], [], []>} : vector<4x256xf32>, vector<4x256xf32>, vector<4x4xf32> -> vector<4x4xf32>
    %14 = arith.addf %12, %13 : vector<4x4xf32>
    %c0_11 = arith.constant 0 : index
    %c0_12 = arith.constant 0 : index
    %15 = vector.load %arg4[%c0_11, %c0_12] : memref<4x4xf32, #tpu.memory_space<vmem>>, vector<4x4xf32>
    tpu.vector_store %arg4[%c0_11, %c0_12], %14 {strides = array<i32>} : memref<4x4xf32, #tpu.memory_space<vmem>>, vector<4x4xf32>,
    return
  }
  func.func @transform_0(%arg0: i32, %arg1: i32) -> (i32, i32, i32) {
    %c0_i32 = arith.constant 0 : i32
    %c0_i32_0 = arith.constant 0 : i32
    return %arg0, %c0_i32, %arg1 : i32, i32, i32
  }
  func.func @transform_1(%arg0: i32, %arg1: i32) -> (i32, i32) {
    %c0_i32 = arith.constant 0 : i32
    %c0_i32_0 = arith.constant 0 : i32
    %c0_i32_1 = arith.constant 0 : i32
    return %c0_i32, %c0_i32_0 : i32, i32
  }
  func.func @transform_2(%arg0: i32, %arg1: i32) -> (i32, i32) {
    %c0_i32 = arith.constant 0 : i32
    %c0_i32_0 = arith.constant 0 : i32
    %c0_i32_1 = arith.constant 0 : i32
    return %c0_i32, %c0_i32_0 : i32, i32
  }
}

</mosaic_0001>

<llo_original>
// kernel: tpu_custom_call.1
$region0: #{tpu_custom_call.1}
  #allocation0 [shape = 'u32[]', space=smem, size = 0x4, offset = 0x4, fixed_abs, tag = 'smem constant byte address 0x4 - core index']
  #allocation1 [shape = 'u32[144,128]{1,0:T(1,128)}', space=vmem, size = 0x12000, scoped, tag = 'internal scratch']
  %s0 = inlined_call_operand.hbm [shape: f32[2,4,256], index: 0, kind: input, shape index: {}]
  %s1 = inlined_call_operand.vmem [shape: f32[4,1], index: 1, kind: output, shape index: {0}]
  %s2 = inlined_call_operand.hbm [shape: f32[4,4], index: 2, kind: output, shape index: {1}]
  %3 = xla_tuple %s1, %s2
  %s4 = sld [smem:[#allocation0]]
  $region53: #{tpu_custom_call.1} parent=0
    _
  %s6 = ssub.s32 1, %s4
  %s7 = scalar_select 0, %s6, %s4
  $region1: #{tpu_custom_call.1} parent=0
    #allocation2 [shape = 'u8[8192]{0}', space=vmem, size = 0x2000, scoped, tag = 'input window, operand 0']
    #allocation3 [shape = 's32[2]{0}', space=sflag, size = 0x8, scoped, tag = 'scoped memory for tpu_custom_call.1']
    #allocation4 [shape = 's32[2]{0}', space=sflag, size = 0x8, scoped, tag = 'scoped memory for tpu_custom_call.1']
    #allocation5 [shape = 'u8[2048]{0}', space=vmem, size = 0x800, scoped, tag = 'output window, operand 1, single buffered']
    %8 = vsyncpa [#allocation3], 0
    %s9 = scalar_lea.sflag [#allocation3], 1
    %10 = vsyncpa %s9, 0
    %11 = vsyncpa [#allocation4], 0
    loop: start=0, step=1, limit=4
    $region2: #{tpu_custom_call.1} parent=1 // loop_pre_header
      _
    $region3: #{tpu_custom_call.1} parent=1 // loop_header
      %s13 = sphi 0, %s17
      %p14 = scmp.ge.s32.totalorder %s13, 4
      %s20 = sphi 0, %s32
      %s21 = sphi 0, %s28
      %s22 = sphi 0, %s20
      %s23 = sphi 0, %s21
      %s24 = sphi 0, %s22
      %s25 = sphi 0, %s23
      %s37 = sphi 0, %s39
      %s40 = sphi 0, %s37
      %s41 = sphi 0, %s40
      %s57 = sphi 0, %s41
      %s61 = sphi 0, %s61
      %s63 = sphi 0, %s61
      %s64 = sphi 0, %s63
      %s78 = sphi 0, %s64
      %s82 = sphi 0, %s82
      %s84 = sphi 0, %s82
      %s85 = sphi 0, %s84
      %s99 = sphi 0, %s85
    $region4: #{tpu_custom_call.1} parent=1 // loop_header_branch
      %16 = sbr.rel (%p14) target = $region8
    $region5: #{tpu_custom_call.1} parent=1 // loop_body
      %s18 = ssub.s32 %s13, 1
      %s19 = ssub.s32 %s13, 2
      %s26 = sadd.s32 1, %s21
      %p27 = scmp.ge.s32.totalorder %s26, 1
      %s28 = scalar_select %p27, 0, %s26
      %s29 = sadd.s32 1, %s20
      %s30 = scalar_select %p27, %s29, %s20
      %p31 = scmp.ge.s32.totalorder %s30, 2
      %s32 = scalar_select %p31, 0, %s30
      %s33 = ssub.s32 %s20, %s32
      %s34 = ssub.s32 %s21, %s28
      %s35 = sor.u32 %s33, %s34
      %p36 = scmp.eq.s32.totalorder %s35, 0
      %s38 = sadd.s32 %s37, 1
      %s39 = scalar_select %p36, %s37, %s38
      %p42 = pneg %p36
      %p43 = scmp.eq.s32.totalorder %s13, 1
      %p44 = por %p42, %p43
      %p45 = scmp.ne.s32.totalorder %s37, %s40
      %p46 = scmp.eq.s32.totalorder %s13, 0
      %p47 = por %p45, %p46
      %p48 = scmp.ne.s32.totalorder %s37, %s40
      %p49 = scmp.eq.s32.totalorder %s18, 1
      %p50 = por %p48, %p49
      %p51 = scmp.ne.s32.totalorder %s40, %s41
      %p52 = scmp.eq.s32.totalorder %s18, 0
      %p53 = por %p51, %p52
      %p54 = scmp.ne.s32.totalorder %s40, %s41
      %p55 = scmp.eq.s32.totalorder %s19, 1
      %p56 = por %p54, %p55
      %p58 = scmp.ne.s32.totalorder %s41, %s57
      %p59 = scmp.eq.s32.totalorder %s19, 0
      %p60 = por %p58, %p59
      %s62 = sadd.s32 %s61, 1
      %p65 = scmp.eq.s32.totalorder %s13, 1
      %p66 = scmp.ne.s32.totalorder %s61, %s63
      %p67 = scmp.eq.s32.totalorder %s13, 0
      %p68 = por %p66, %p67
      %p69 = scmp.ne.s32.totalorder %s61, %s63
      %p70 = scmp.eq.s32.totalorder %s18, 1
      %p71 = por %p69, %p70
      %p72 = scmp.ne.s32.totalorder %s63, %s64
      %p73 = scmp.eq.s32.totalorder %s18, 0
      %p74 = por %p72, %p73
      %p75 = scmp.ne.s32.totalorder %s63, %s64
      %p76 = scmp.eq.s32.totalorder %s19, 1
      %p77 = por %p75, %p76
      %p79 = scmp.ne.s32.totalorder %s64, %s78
      %p80 = scmp.eq.s32.totalorder %s19, 0
      %p81 = por %p79, %p80
      %s83 = sadd.s32 %s82, 1
      %p86 = scmp.eq.s32.totalorder %s13, 1
      %p87 = scmp.ne.s32.totalorder %s82, %s84
      %p88 = scmp.eq.s32.totalorder %s13, 0
      %p89 = por %p87, %p88
      %p90 = scmp.ne.s32.totalorder %s82, %s84
      %p91 = scmp.eq.s32.totalorder %s18, 1
      %p92 = por %p90, %p91
      %p93 = scmp.ne.s32.totalorder %s84, %s85
      %p94 = scmp.eq.s32.totalorder %s18, 0
      %p95 = por %p93, %p94
      %p96 = scmp.ne.s32.totalorder %s84, %s85
      %p97 = scmp.eq.s32.totalorder %s19, 1
      %p98 = por %p96, %p97
      %p100 = scmp.ne.s32.totalorder %s85, %s99
      %p101 = scmp.eq.s32.totalorder %s19, 0
      %p102 = por %p100, %p101
      %p103 = scmp.le.s32.totalorder 1, %s13
      %p104 = scmp.lt.s32.totalorder %s13, 3
      %p105 = pnand %p103, %p104
      %p106 = pneg %p105
      // Predicated region
      $region9: #{tpu_custom_call.1} parent=5 // pred_check
        _
      $region10: #{tpu_custom_call.1} parent=5 // pred_check_branch
        %108 = sbr.rel (%p105) target = $region12
      $region11: #{tpu_custom_call.1} parent=5 // pred_region
        %s109 = ssub.s32 %s13, 1
      $region12: #{tpu_custom_call.1} parent=5 // pred_fallthru
        _
      %p110 = scmp.lt.s32.totalorder %s13, 2
      // Predicated region
      $region13: #{tpu_custom_call.1} parent=5 // pred_check
        %p111 = pneg %p110
      $region14: #{tpu_custom_call.1} parent=5 // pred_check_branch
        %113 = sbr.rel (%p111) target = $region16
      $region15: #{tpu_custom_call.1} parent=5 // pred_region
        // Predicated region
        $region17: #{tpu_custom_call.1} parent=15 // pred_check
          %p114 = pneg %p47
        $region18: #{tpu_custom_call.1} parent=15 // pred_check_branch
          %116 = sbr.rel (%p114) target = $region20
        $region19: #{tpu_custom_call.1} parent=15 // pred_region
          %s117 = sand.u32 %s37, 1
          %s118 = scalar_lea.sflag [#allocation3], %s117
          %s119 = sand.u32 %s37, 1
          %s120 = smul.addr %s119, 8
          %s121 = scalar_lea.vmem [#allocation2], %s120
          %s122 = smul.u32 2, %s21
          %s124 = ssub.s32 128, 128
          %125 = vsyncadd %s118, %s124
          %s126 = smul.addr %s20, 2
          %s127 = sadd.s32 %s122, %s126
          %s128 = smul.addr %s127, 64
          %s129 = scalar_lea.hbm %s0, %s128
          %s131 = sshll.u32 %s121, 4
          %s132 = int_to_ptr.vmem [resolvable:$true] %s131
          %134 = dma.hbm_to_vmem [thread:$0]  %s129, 128, %s132, %s118
        $region20: #{tpu_custom_call.1} parent=15 // pred_fallthru
          _
      $region16: #{tpu_custom_call.1} parent=5 // pred_fallthru
        _
      %p135 = scmp.le.s32.totalorder 1, %s13
      %p136 = scmp.lt.s32.totalorder %s13, 3
      %p137 = pnand %p135, %p136
      %p138 = pneg %p137
      // Predicated region
      $region21: #{tpu_custom_call.1} parent=5 // pred_check
        _
      $region22: #{tpu_custom_call.1} parent=5 // pred_check_branch
        %140 = sbr.rel (%p137) target = $region24
      $region23: #{tpu_custom_call.1} parent=5 // pred_region
        %s141 = ssub.s32 %s13, 1
        %s142 = sand.u32 %s40, 1
        %s143 = scalar_lea.sflag [#allocation3], %s142
        %s144 = sand.u32 %s40, 1
        %s145 = smul.addr %s144, 8
        %s146 = scalar_lea.vmem [#allocation2], %s145
        // Predicated region
        $region25: #{tpu_custom_call.1} parent=23 // pred_check
          %p147 = pneg %p53
        $region26: #{tpu_custom_call.1} parent=23 // pred_check_branch
          %149 = sbr.rel (%p147) target = $region28
        $region27: #{tpu_custom_call.1} parent=23 // pred_region
          %150 = dma.done %s143, 128
        $region28: #{tpu_custom_call.1} parent=23 // pred_fallthru
          _
        %s151 = sand.u32 %s40, 1
        %s152 = scalar_lea.sflag [#allocation3], %s151
        %s153 = sand.u32 %s40, 1
        %s154 = smul.addr %s153, 8
        %s155 = scalar_lea.vmem [#allocation2], %s154
        %p156 = pneg %p53
        %p157 = pneg %p50
        %p158 = pneg %p74
        %p159 = pneg %p71
        %p160 = pneg %p95
        %p161 = pneg %p92
        %s162 = smul.u32 2, %s23
        %p163 = scmp.eq.s32.totalorder %s22, 0
        %p164 = scmp.eq.s32.totalorder %s23, 0
        %p165 = pnand %p163, %p164
        %p166 = pneg %p165
        // Predicated region
        $region29: #{tpu_custom_call.1} parent=23 // pred_check
          _
        $region30: #{tpu_custom_call.1} parent=23 // pred_check_branch
          %168 = sbr.rel (%p165) target = $region32
        $region31: #{tpu_custom_call.1} parent=23 // pred_region
          %vm169 = vcmask 3072
          %170 = vst.msk [vmem:[%s1] sm:$0xf] %vm169, 0.0
          %vm171 = vcmask 27648
          %172 = vst.msk [vmem:[#allocation5] sm:$0xf] %vm171, 0.0
        $region32: #{tpu_custom_call.1} parent=23 // pred_fallthru
          _
        %v173 = vld [vmem:[%s146] sm:$0xff]
        %v174 = vld [vmem:[%s1] sm:$0xf]
        %v176 = vcombine.high %v173, %v173
        %vm178 = vcmask 1043456
        %v179 = vsel %vm178, %v173, 0.0
        %v180 = vsel %vm178, %v176, 0.0
        %v181 = vadd.f32 %v179, %v180
        %182 = vadd.xlane.f32.xlu0 %v181
        %v183 = vpop.xlane.xlu0 %182
        %v184 = vadd.f32 %v174, %v183
        %vm185 = vcmask 3072
        %186 = vst.msk [vmem:[%s1] sm:$0xf] %vm185, %v184
        %v187 = vld [vmem:[#allocation5] sm:$0xf]
        %188 = vmatprep.subr.mxu0 0.0
        %189 = vmatpush1.xpose.msra.mxu0 0.0
        %190 = vmatprep.subr.mxu0 0.0
        %191 = vmatpush1.xpose.msra.mxu0 0.0
        %192 = vmatprep.subr.mxu0 0.0
        %193 = vmatpush1.xpose.msra.mxu0 0.0
        %194 = vmatprep.subr.mxu0 0.0
        %195 = vmatpush1.xpose.msra.mxu0 0.0
        %196 = vmatprep.subr.mxu0 0.0
        %197 = vmatpush1.xpose.msra.mxu0 0.0
        %198 = vmatprep.subr.mxu0 0.0
        %199 = vmatpush1.xpose.msra.mxu0 0.0
        %200 = vmatprep.subr.mxu0 0.0
        %201 = vmatpush1.xpose.msra.mxu0 0.0
        %202 = vmatprep.subr.mxu0 0.0
        %203 = vmatpush1.xpose.msra.mxu0 0.0
        %204 = vmatprep.subr.mxu0 0.0
        %205 = vmatpush1.xpose.msra.mxu0 0.0
        %206 = vmatprep.subr.mxu0 0.0
        %207 = vmatpush1.xpose.msra.mxu0 0.0
        %208 = vmatprep.subr.mxu0 0.0
        %209 = vmatpush1.xpose.msra.mxu0 0.0
        %210 = vmatprep.subr.mxu0 0.0
        %211 = vmatpush1.xpose.msra.mxu0 0.0
        %212 = vmatprep.subr.mxu0 0.0
        %213 = vmatpush1.xpose.msra.mxu0 0.0
        %214 = vmatprep.subr.mxu0 0.0
        %215 = vmatpush1.xpose.msra.mxu0 0.0
        %216 = vmatprep.subr.mxu0 0.0
        %217 = vmatpush1.xpose.msra.mxu0 0.0
        %218 = vmatprep.subr.mxu0 %v176
        %219 = vmatpush1.xpose.msra.mxu0 %v173
        %220 = vmatprep.subr.mxu0 0.0
        %221 = vmatpush2.xpose.msra.mxu0 0.0
        %222 = vmatprep.subr.mxu0 0.0
        %223 = vmatpush2.xpose.msra.mxu0 0.0
        %224 = vmatprep.subr.mxu0 0.0
        %225 = vmatpush2.xpose.msra.mxu0 0.0
        %226 = vmatprep.subr.mxu0 0.0
        %227 = vmatpush2.xpose.msra.mxu0 0.0
        %228 = vmatprep.subr.mxu0 0.0
        %229 = vmatpush2.xpose.msra.mxu0 0.0
        %230 = vmatprep.subr.mxu0 0.0
        %231 = vmatpush2.xpose.msra.mxu0 0.0
        %232 = vmatprep.subr.mxu0 0.0
        %233 = vmatpush2.xpose.msra.mxu0 0.0
        %234 = vmatprep.subr.mxu0 0.0
        %235 = vmatpush2.xpose.msra.mxu0 0.0
        %236 = vmatprep.subr.mxu0 0.0
        %237 = vmatpush2.xpose.msra.mxu0 0.0
        %238 = vmatprep.subr.mxu0 0.0
        %239 = vmatpush2.xpose.msra.mxu0 0.0
        %240 = vmatprep.subr.mxu0 0.0
        %241 = vmatpush2.xpose.msra.mxu0 0.0
        %242 = vmatprep.subr.mxu0 0.0
        %243 = vmatpush2.xpose.msra.mxu0 0.0
        %244 = vmatprep.subr.mxu0 0.0
        %245 = vmatpush2.xpose.msra.mxu0 0.0
        %246 = vmatprep.subr.mxu0 0.0
        %247 = vmatpush2.xpose.msra.mxu0 0.0
        %248 = vmatprep.subr.mxu0 0.0
        %249 = vmatpush2.xpose.msra.mxu0 0.0
        %250 = vmatprep.subr.mxu0 0.0
        %251 = vmatpush2.xpose.msra.mxu0 0.0
        %252 = vmatprep.mubr.f32.mxu0 %v176
        %253 = vmatmul.mubr.f32.gmra.mxu0 %v173
        %v254 = vpop.f32.mrf.mxu0
        %v255 = vadd.f32 0.0, %v254
        %v256 = vpop.f32.mrf.mxu0
        %257 = vdwg.mxu0
        %v258 = vadd.f32 %v187, %v255
        %vm259 = vcmask 27648
        %260 = vst.msk [vmem:[#allocation5] sm:$0xf] %vm259, %v258
        // Predicated region
        $region33: #{tpu_custom_call.1} parent=23 // pred_check
          %p261 = pneg %p71
        $region34: #{tpu_custom_call.1} parent=23 // pred_check_branch
          %263 = sbr.rel (%p261) target = $region36
        $region35: #{tpu_custom_call.1} parent=23 // pred_region
          _
        $region36: #{tpu_custom_call.1} parent=23 // pred_fallthru
          _
        // Predicated region
        $region37: #{tpu_custom_call.1} parent=23 // pred_check
          %p264 = pneg %p92
        $region38: #{tpu_custom_call.1} parent=23 // pred_check_branch
          %266 = sbr.rel (%p264) target = $region40
        $region39: #{tpu_custom_call.1} parent=23 // pred_region
          %s268 = ssub.s32 64, 64
          %269 = vsyncadd [#allocation4], %s268
          %s271 = sshll.u32 [#allocation5], 4
          %s272 = int_to_ptr.vmem [resolvable:$true] %s271
          %274 = dma.vmem_to_hbm [thread:$0]  %s272, 64, %s2, [#allocation4]
        $region40: #{tpu_custom_call.1} parent=23 // pred_fallthru
          _
        // Predicated region
        $region41: #{tpu_custom_call.1} parent=23 // pred_check
          %p275 = pneg %p71
        $region42: #{tpu_custom_call.1} parent=23 // pred_check_branch
          %277 = sbr.rel (%p275) target = $region44
        $region43: #{tpu_custom_call.1} parent=23 // pred_region
          _
        $region44: #{tpu_custom_call.1} parent=23 // pred_fallthru
          _
        // Predicated region
        $region45: #{tpu_custom_call.1} parent=23 // pred_check
          %p278 = pneg %p92
        $region46: #{tpu_custom_call.1} parent=23 // pred_check_branch
          %280 = sbr.rel (%p278) target = $region48
        $region47: #{tpu_custom_call.1} parent=23 // pred_region
          %281 = dma.done [#allocation4], 64
        $region48: #{tpu_custom_call.1} parent=23 // pred_fallthru
          _
      $region24: #{tpu_custom_call.1} parent=5 // pred_fallthru
        _
      %p282 = scmp.le.s32.totalorder 2, %s13
      // Predicated region
      $region49: #{tpu_custom_call.1} parent=5 // pred_check
        %p283 = pneg %p282
      $region50: #{tpu_custom_call.1} parent=5 // pred_check_branch
        %285 = sbr.rel (%p283) target = $region52
      $region51: #{tpu_custom_call.1} parent=5 // pred_region
        %s286 = ssub.s32 %s13, 2
      $region52: #{tpu_custom_call.1} parent=5 // pred_fallthru
        _
    $region6: #{tpu_custom_call.1} parent=1 // loop_footer
      %s17 = sadd.s32 1, %s13
    $region7: #{tpu_custom_call.1} parent=1 // loop_footer_branch
      %12 = sbr.rel target = $region3
    $region8: #{tpu_custom_call.1} parent=1 // loop_exit
      _
    %287 = vsyncpa [#allocation3], 1
    %s288 = scalar_lea.sflag [#allocation3], 1
    %289 = vsyncpa %s288, 1
    %290 = vsyncpa [#allocation4], 1
    %s291 = scalar_lea.sflag [#allocation4], 1
    %292 = vsyncpa %s291, 1

</llo_original>
